<compile_context>
chip_gen: v7x
topology: tpu7x:2x2x1
jax: 0.10.0
libtpu: 0.0.40
codegen_flags: <defaults>
</compile_context>

<pallas_src>
import functools

import jax
import jax.numpy as jnp
from jax.experimental import pallas as pl
from jax.experimental.pallas import tpu as pltpu


def _round_up(x, m):
    return ((x + m - 1) // m) * m


def _vmem_budget_bytes():
    """Per-core VMEM capacity minus fixed headroom for compiler scratch."""
    cap = 64 << 20  # conservative fallback (v7x per-TensorCore)
    try:
        info = pltpu.get_tpu_info()
        cap = int(getattr(info, "vmem_capacity_bytes", cap))
    except Exception:
        pass
    return max(cap - (8 << 20), 16 << 20)


# ---------------------------------------------------------------------------
# Kernels
# ---------------------------------------------------------------------------

def _ffn_swiglu_kernel(x_ref, w12_ref, b12_ref, wout_ref, bout_ref,
                       out_ref, acc_ref, *, th):
    """Tiled path: grid = (row tiles, hidden tiles); f32 accumulator."""
    j = pl.program_id(1)

    # Fused fc / fc_act projection: one MXU pass, f32 accumulation.
    x = x_ref[...].astype(w12_ref.dtype)
    z = jnp.dot(x, w12_ref[...],
                preferred_element_type=jnp.float32) + b12_ref[...]
    h = z[:, :th]                        # fc branch      (tm, th), f32
    g = z[:, th:]                        # fc_act branch  (tm, th), f32
    y = h * (g * jax.nn.sigmoid(g))      # SwiGLU in f32 (sigmoid -> EUP)

    @pl.when(j == 0)
    def _init():
        acc_ref[...] = jnp.zeros_like(acc_ref)

    # Output projection, accumulated over hidden tiles in f32.
    acc_ref[...] += jnp.dot(y.astype(wout_ref.dtype), wout_ref[...],
                            preferred_element_type=jnp.float32)

    @pl.when(j == pl.num_programs(1) - 1)
    def _finalize():
        out_ref[...] = (acc_ref[...] + bout_ref[...]).astype(out_ref.dtype)


def _ffn_swiglu_resident_kernel(x_ref, w12_ref, b12_ref, wout_ref, bout_ref,
                                out_ref, *, th, nh):
    """Weights-resident fast path: 1-D grid over row tiles only."""
    x = x_ref[...].astype(w12_ref.dtype)
    acc = jnp.zeros((x.shape[0], out_ref.shape[1]), jnp.float32)
    for j in range(nh):                      # nh is small (<= 8) by construction
        c0 = 2 * th * j
        z = jnp.dot(x, w12_ref[:, pl.ds(c0, 2 * th)],
                    preferred_element_type=jnp.float32) \
            + b12_ref[:, pl.ds(c0, 2 * th)]
        h = z[:, :th]
        g = z[:, th:]
        y = h * (g * jax.nn.sigmoid(g))
        acc = acc + jnp.dot(y.astype(wout_ref.dtype),
                            wout_ref[pl.ds(th * j, th), :],
                            preferred_element_type=jnp.float32)
    out_ref[...] = (acc + bout_ref[...]).astype(out_ref.dtype)


# ---------------------------------------------------------------------------
# One-time weight re-layout
# ---------------------------------------------------------------------------

def prepare_ffn_swiglu_params(w_fc, b_fc, w_act, b_act, w_out, b_out,
                              *, weight_dtype=jnp.bfloat16, tm=None, th=None):
    """One-time weight re-layout (call at load time, NOT per forward).

    PyTorch nn.Linear layout: w_fc, w_act: [hidden, dim]; w_out: [dim, hidden].
    """
    hidden, dim = w_fc.shape
    budget = _vmem_budget_bytes()
    big_vmem = budget >= (96 << 20)          # v5e / v6e (128 MiB VMEM)

    # Hidden tile: 128-aligned so the [fc|act] split is lane-aligned; pick the
    # candidate that minimizes hidden padding, then the tile count.
    if th is None:
        th_max = 1024 if big_vmem else 512
        best_key, best_th = None, 128
        for cand in range(128, th_max + 1, 128):
            hp_c = _round_up(hidden, cand)
            key = (hp_c, hp_c // cand)
            if best_key is None or key < best_key:
                best_key, best_th = key, cand
        th = best_th
    else:
        th = _round_up(th, 128)
    th = min(th, _round_up(hidden, 128))

    hp = _round_up(hidden, th)
    nh = hp // th
    dp = _round_up(dim, 128)                 # lane-dense feature dim

    if tm is None:
        tm = 512 if big_vmem else 384        # forward shrinks if it won't fit

    wfc_t = jnp.pad(w_fc.T, ((0, dp - dim), (0, hp - hidden)))
    wact_t = jnp.pad(w_act.T, ((0, dp - dim), (0, hp - hidden)))
    # Interleave per hidden tile: columns of tile j are [fc_j | act_j].
    w12 = jnp.stack([wfc_t.reshape(dp, nh, th),
                     wact_t.reshape(dp, nh, th)], axis=2).reshape(dp, 2 * hp)
    w12 = w12.astype(weight_dtype)

    bfc = jnp.pad(b_fc.astype(jnp.float32), (0, hp - hidden))
    bact = jnp.pad(b_act.astype(jnp.float32), (0, hp - hidden))
    b12 = jnp.stack([bfc.reshape(nh, th),
                     bact.reshape(nh, th)], axis=1).reshape(1, 2 * hp)

    wout_t = jnp.pad(w_out.T, ((0, hp - hidden), (0, dp - dim))).astype(weight_dtype)
    bout = jnp.pad(b_out.astype(jnp.float32), (0, dp - dim)).reshape(1, dp)

    return dict(w12=w12, b12=b12, wout_t=wout_t, bout=bout,
                dim=dim, hidden=hidden, dp=dp, hp=hp, th=th, nh=nh, tm=tm,
                vmem_budget=budget)


# ---------------------------------------------------------------------------
# Forward
# ---------------------------------------------------------------------------

def ffn_swiglu(x, params, *, force_tiled=False):
    """x: [B, S, dim] -> [B, S, dim]."""
    B, S, dim = x.shape
    assert dim == params["dim"]
    dp, hp, th, nh = params["dp"], params["hp"], params["th"], params["nh"]
    hidden = params["hidden"]
    budget = params["vmem_budget"]
    w12, b12 = params["w12"], params["b12"]
    wout_t, bout = params["wout_t"], params["bout"]

    N = B * S
    isz_x = jnp.dtype(x.dtype).itemsize
    isz_w = jnp.dtype(w12.dtype).itemsize
    isz_o = isz_x

    # Weights-resident fast path when padded weights fit comfortably in VMEM.
    w_bytes = (w12.size + wout_t.size) * isz_w + (b12.size + bout.size) * 4
    resident = (not force_tiled) and (2 * w_bytes <= budget // 2) and (nh <= 8)

    # Honest footprint (double-buffered streams already counted once),
    # including an estimate of in-kernel f32 temporaries (z / y / acc).
    def footprint(tm_):
        io = 2 * tm_ * dp * isz_x + 2 * tm_ * dp * isz_o          # x + out streams
        tmp = 3 * tm_ * th * 4 + tm_ * dp * 4                     # z, y, acc
        if resident:
            return io + 2 * w_bytes + tmp
        wtiles = (2 * dp * 2 * th * isz_w                          # [Wfc|Wact]_j
                  + 2 * th * dp * isz_w                            # Wout_j
                  + 2 * (2 * th + dp) * 4)                         # biases
        return io + wtiles + tmp

    # Large row tile for MXU utilization; shrink (8-aligned) for tiny inputs
    # or when the footprint exceeds the generation-aware VMEM budget.
    tm = min(params["tm"], _round_up(N, 8))
    while tm > 8 and footprint(tm) > budget:
        tm = max(8, _round_up(tm // 2, 8))

    np_ = _round_up(N, tm)
    x2 = x.reshape(N, dim)
    if np_ != N or dp != dim:
        x2 = jnp.pad(x2, ((0, np_ - N), (0, dp - dim)))

    vmem_limit = int(min(footprint(tm) + (16 << 20), budget))

    # Advisory cost estimate for the XLA scheduler.
    n_row_tiles = np_ // tm
    flops = 6 * N * hidden * dim
    bytes_accessed = 2 * N * dim * isz_x + (w_bytes if resident
                                            else w_bytes * n_row_tiles)
    cost = pl.CostEstimate(flops=int(flops),
                           transcendentals=int(N * hidden),
                           bytes_accessed=int(bytes_accessed))

    if resident:
        kernel = functools.partial(_ffn_swiglu_resident_kernel, th=th, nh=nh)
        out2 = pl.pallas_call(
            kernel,
            out_shape=jax.ShapeDtypeStruct((np_, dp), x.dtype),
            grid_spec=pltpu.PrefetchScalarGridSpec(
                num_scalar_prefetch=0,
                grid=(n_row_tiles,),
                in_specs=[
                    pl.BlockSpec((tm, dp), lambda i: (i, 0)),       # x rows
                    pl.BlockSpec((dp, 2 * hp), lambda i: (0, 0)),   # [Wfc|Wact] (resident)
                    pl.BlockSpec((1, 2 * hp), lambda i: (0, 0)),    # fused biases
                    pl.BlockSpec((hp, dp), lambda i: (0, 0)),       # Wout (resident)
                    pl.BlockSpec((1, dp), lambda i: (0, 0)),        # b_out
                ],
                out_specs=pl.BlockSpec((tm, dp), lambda i: (i, 0)),
            ),
            compiler_params=pltpu.CompilerParams(
                dimension_semantics=("parallel",),
                vmem_limit_bytes=vmem_limit),
            cost_estimate=cost,
        )(x2, w12, b12, wout_t, bout)
    else:
        kernel = functools.partial(_ffn_swiglu_kernel, th=th)
        out2 = pl.pallas_call(
            kernel,
            out_shape=jax.ShapeDtypeStruct((np_, dp), x.dtype),
            grid_spec=pltpu.PrefetchScalarGridSpec(
                num_scalar_prefetch=0,
                grid=(n_row_tiles, nh),
                in_specs=[
                    pl.BlockSpec((tm, dp), lambda i, j: (i, 0)),       # x rows
                    pl.BlockSpec((dp, 2 * th), lambda i, j: (0, j)),   # [Wfc|Wact]_j
                    pl.BlockSpec((1, 2 * th), lambda i, j: (0, j)),    # [bfc|bact]_j
                    pl.BlockSpec((th, dp), lambda i, j: (j, 0)),       # Wout tile j
                    pl.BlockSpec((1, dp), lambda i, j: (0, 0)),        # b_out
                ],
                out_specs=pl.BlockSpec((tm, dp), lambda i, j: (i, 0)),
                scratch_shapes=[pltpu.VMEM((tm, dp), jnp.float32)],
            ),
            compiler_params=pltpu.CompilerParams(
                dimension_semantics=("parallel", "arbitrary"),
                vmem_limit_bytes=vmem_limit),
            cost_estimate=cost,
        )(x2, w12, b12, wout_t, bout)

    return out2[:N, :dim].reshape(B, S, dim)


# ---------------------------------------------------------------------------
# Reference + self-test
# ---------------------------------------------------------------------------

def _reference(x, w_fc, b_fc, w_act, b_act, w_out, b_out):
    xf = x.astype(jnp.float32)
    h = xf @ w_fc.T.astype(jnp.float32) + b_fc
    g = xf @ w_act.T.astype(jnp.float32) + b_act
    g = g * jax.nn.sigmoid(g)
    o = (h * g) @ w_out.T.astype(jnp.float32) + b_out
    return o.astype(x.dtype)


if __name__ == "__main__":
    # Small shapes consistent with the module: dim=32, dim_ff_hidden=64.
    B, S, dim, hidden = 2, 8, 32, 64

    key = jax.random.PRNGKey(0)
    kx, k1, k2, k3, k4, k5, k6 = jax.random.split(key, 7)

    x = jax.random.normal(kx, (B, S, dim), dtype=jnp.float32)

    # Deterministic synthetic parameters (PyTorch nn.Linear layout).
    w_fc = jax.random.normal(k1, (hidden, dim), dtype=jnp.float32) * 0.05
    b_fc = jax.random.normal(k2, (hidden,), dtype=jnp.float32) * 0.01
    w_act = jax.random.normal(k3, (hidden, dim), dtype=jnp.float32) * 0.05
    b_act = jax.random.normal(k4, (hidden,), dtype=jnp.float32) * 0.01
    w_out = jax.random.normal(k5, (dim, hidden), dtype=jnp.float32) * 0.05
    b_out = jax.random.normal(k6, (dim,), dtype=jnp.float32) * 0.01

    ref = _reference(x, w_fc, b_fc, w_act, b_act, w_out, b_out)

    # bf16 weights (default): resident fast path and forced tiled path.
    params_bf16 = prepare_ffn_swiglu_params(w_fc, b_fc, w_act, b_act,
                                            w_out, b_out)
    out_resident = jax.block_until_ready(ffn_swiglu(x, params_bf16))
    out_tiled = jax.block_until_ready(ffn_swiglu(x, params_bf16,
                                                 force_tiled=True))
    assert out_resident.shape == (B, S, dim)
    assert out_tiled.shape == (B, S, dim)
    # bf16 weights/activations: loosened tolerance vs f32 reference (expected).
    assert jnp.allclose(out_resident, ref, atol=2e-2, rtol=2e-2), \
        "bf16 resident path mismatch vs reference"
    assert jnp.allclose(out_tiled, ref, atol=2e-2, rtol=2e-2), \
        "bf16 tiled path mismatch vs reference"

    # f32 weights sanity check at tight tolerance.
    params_f32 = prepare_ffn_swiglu_params(w_fc, b_fc, w_act, b_act,
                                           w_out, b_out,
                                           weight_dtype=jnp.float32)
    out_f32 = jax.block_until_ready(ffn_swiglu(x, params_f32))
    assert jnp.allclose(out_f32, ref, atol=1e-4, rtol=1e-4), \
        "f32 path mismatch vs reference"

    print("KERNEL_OK")
</pallas_src>

<mosaic_0001>
module attributes {stable_mosaic.version = 11 : i64} {
  func.func @_ffn_swiglu_resident_kernel(%arg0: i32, %arg1: memref<16x128xf32, #tpu.memory_space<vmem>>, %arg2: memref<128x256xbf16, #tpu.memory_space<vmem>>, %arg3: memref<1x256xf32, #tpu.memory_space<vmem>>, %arg4: memref<128x128xbf16, #tpu.memory_space<vmem>>, %arg5: memref<1x128xf32, #tpu.memory_space<vmem>>, %arg6: memref<16x128xf32, #tpu.memory_space<vmem>>) attributes {dimension_semantics = [#tpu.dimension_semantics<parallel>], iteration_bounds = array<i64: 1>, scalar_prefetch = 0 : i64, scratch_operands = 0 : i64, tpu.core_type = #tpu.core_type<tc>, window_params = [{transform_indices = @transform_0, window_bounds = array<i64: 16, 128>}, {pipeline_mode = #tpu.pipeline_mode<synchronous>, transform_indices = @transform_1, window_bounds = array<i64: 128, 256>}, {pipeline_mode = #tpu.pipeline_mode<synchronous>, transform_indices = @transform_2, window_bounds = array<i64: 1, 256>}, {pipeline_mode = #tpu.pipeline_mode<synchronous>, transform_indices = @transform_3, window_bounds = array<i64: 128, 128>}, {pipeline_mode = #tpu.pipeline_mode<synchronous>, transform_indices = @transform_4, window_bounds = array<i64: 1, 128>}, {transform_indices = @transform_5, window_bounds = array<i64: 16, 128>}]} {
    %c0 = arith.constant 0 : index
    %c0_0 = arith.constant 0 : index
    %0 = vector.load %arg1[%c0, %c0_0] : memref<16x128xf32, #tpu.memory_space<vmem>>, vector<16x128xf32>
    %1 = arith.truncf %0 : vector<16x128xf32> to vector<16x128xbf16>
    %cst = arith.constant 0.000000e+00 : f32
    %2 = vector.broadcast %cst : f32 to vector<16x128xf32>
    %c0_1 = arith.constant 0 : index
    %c0_2 = arith.constant 0 : index
    %3 = vector.load %arg2[%c0_1, %c0_2] : memref<128x256xbf16, #tpu.memory_space<vmem>>, vector<128x256xbf16>
    %cst_3 = arith.constant dense<0.000000e+00> : vector<16x256xf32>
    %4 = tpu.matmul %1, %3, %cst_3 {dimension_numbers = #tpu.dot_dimension_numbers<[1], [0], [0], [1], [0, 0, 1, 1], [], []>} : vector<16x128xbf16>, vector<128x256xbf16>, vector<16x256xf32> -> vector<16x256xf32>
    %c0_4 = arith.constant 0 : index
    %c0_5 = arith.constant 0 : index
    %5 = vector.load %arg3[%c0_4, %c0_5] : memref<1x256xf32, #tpu.memory_space<vmem>>, vector<1x256xf32>
    %6 = vector.broadcast %5 : vector<1x256xf32> to vector<16x256xf32>
    %7 = arith.addf %4, %6 : vector<16x256xf32>
    %8 = vector.extract_strided_slice %7 {offsets = [0, 0], sizes = [16, 128], strides = [1, 1]} : vector<16x256xf32> to vector<16x128xf32>
    %9 = vector.extract_strided_slice %7 {offsets = [0, 128], sizes = [16, 128], strides = [1, 1]} : vector<16x256xf32> to vector<16x128xf32>
    %10 = arith.negf %9 : vector<16x128xf32>
    %11 = math.exp %10 : vector<16x128xf32>
    %cst_6 = arith.constant 1.000000e+00 : f32
    %12 = vector.broadcast %cst_6 : f32 to vector<16x128xf32>
    %13 = arith.addf %12, %11 : vector<16x128xf32>
    %14 = arith.divf %12, %13 : vector<16x128xf32>
    %15 = arith.mulf %9, %14 : vector<16x128xf32>
    %16 = arith.mulf %8, %15 : vector<16x128xf32>
    %17 = arith.truncf %16 : vector<16x128xf32> to vector<16x128xbf16>
    %c0_7 = arith.constant 0 : index
    %c0_8 = arith.constant 0 : index
    %18 = vector.load %arg4[%c0_7, %c0_8] : memref<128x128xbf16, #tpu.memory_space<vmem>>, vector<128x128xbf16>
    %cst_9 = arith.constant dense<0.000000e+00> : vector<16x128xf32>
    %19 = tpu.matmul %17, %18, %cst_9 {dimension_numbers = #tpu.dot_dimension_numbers<[1], [0], [0], [1], [0, 0, 1, 1], [], []>} : vector<16x128xbf16>, vector<128x128xbf16>, vector<16x128xf32> -> vector<16x128xf32>
    %20 = arith.addf %2, %19 : vector<16x128xf32>
    %c0_10 = arith.constant 0 : index
    %c0_11 = arith.constant 0 : index
    %21 = vector.load %arg5[%c0_10, %c0_11] : memref<1x128xf32, #tpu.memory_space<vmem>>, vector<1x128xf32>
    %22 = vector.broadcast %21 : vector<1x128xf32> to vector<16x128xf32>
    %23 = arith.addf %20, %22 : vector<16x128xf32>
    %c0_12 = arith.constant 0 : index
    %c0_13 = arith.constant 0 : index
    %24 = vector.load %arg6[%c0_12, %c0_13] : memref<16x128xf32, #tpu.memory_space<vmem>>, vector<16x128xf32>
    tpu.vector_store %arg6[%c0_12, %c0_13], %23 {strides = array<i32>} : memref<16x128xf32, #tpu.memory_space<vmem>>, vector<16x128xf32>,
    return
  }
  func.func @transform_0(%arg0: i32) -> (i32, i32) {
    %c0_i32 = arith.constant 0 : i32
    %c0_i32_0 = arith.constant 0 : i32
    return %arg0, %c0_i32 : i32, i32
  }
  func.func @transform_1(%arg0: i32) -> (i32, i32) {
    %c0_i32 = arith.constant 0 : i32
    %c0_i32_0 = arith.constant 0 : i32
    %c0_i32_1 = arith.constant 0 : i32
    return %c0_i32, %c0_i32_0 : i32, i32
  }
  func.func @transform_2(%arg0: i32) -> (i32, i32) {
    %c0_i32 = arith.constant 0 : i32
    %c0_i32_0 = arith.constant 0 : i32
    %c0_i32_1 = arith.constant 0 : i32
    return %c0_i32, %c0_i32_0 : i32, i32
  }
  func.func @transform_3(%arg0: i32) -> (i32, i32) {
    %c0_i32 = arith.constant 0 : i32
    %c0_i32_0 = arith.constant 0 : i32
    %c0_i32_1 = arith.constant 0 : i32
    return %c0_i32, %c0_i32_0 : i32, i32
  }
  func.func @transform_4(%arg0: i32) -> (i32, i32) {
    %c0_i32 = arith.constant 0 : i32
    %c0_i32_0 = arith.constant 0 : i32
    %c0_i32_1 = arith.constant 0 : i32
    return %c0_i32, %c0_i32_0 : i32, i32
  }
  func.func @transform_5(%arg0: i32) -> (i32, i32) {
    %c0_i32 = arith.constant 0 : i32
    %c0_i32_0 = arith.constant 0 : i32
    return %arg0, %c0_i32 : i32, i32
  }
}

</mosaic_0001>

<llo_original>
// kernel: tpu_custom_call.1
$region0: #{tpu_custom_call.1}
  #allocation0 [shape = 'u32[]', space=smem, size = 0x4, offset = 0x4, fixed_abs, tag = 'smem constant byte address 0x4 - core index']
  #allocation1 [shape = 'u32[144,128]{1,0:T(1,128)}', space=vmem, size = 0x12000, scoped, tag = 'internal scratch']
  %s0 = inlined_call_operand.hbm [shape: f32[16,128], index: 0, kind: input, shape index: {}]
  %s1 = inlined_call_operand.hbm [shape: bf16[128,256], index: 1, kind: input, shape index: {}]
  %s2 = inlined_call_operand.vmem [shape: f32[1,256], index: 2, kind: input, shape index: {}]
  %s3 = inlined_call_operand.hbm [shape: bf16[128,128], index: 3, kind: input, shape index: {}]
  %s4 = inlined_call_operand.vmem [shape: f32[1,128], index: 4, kind: input, shape index: {}]
  %s5 = inlined_call_operand.hbm [shape: f32[16,128], index: 5, kind: output, shape index: {}]
  %s6 = sld [smem:[#allocation0]]
  $region42: #{tpu_custom_call.1} parent=0
    _
  %s8 = ssub.s32 1, %s6
  %s9 = scalar_select 0, %s8, %s6
  $region1: #{tpu_custom_call.1} parent=0
    #allocation2 [shape = 'u8[8192]{0}', space=vmem, size = 0x2000, scoped, tag = 'input window, operand 0, single buffered']
    #allocation3 [shape = 's32[1]{0}', space=sflag, size = 0x4, scoped, tag = 'scoped memory for tpu_custom_call.1']
    #allocation4 [shape = 's32[1]{0}', space=sflag, size = 0x4, scoped, tag = 'scoped memory for tpu_custom_call.1']
    #allocation5 [shape = 'u8[65536]{0}', space=vmem, size = 0x10000, scoped, tag = 'input window, operand 1, single buffered']
    #allocation6 [shape = 's32[1]{0}', space=sflag, size = 0x4, scoped, tag = 'scoped memory for tpu_custom_call.1']
    #allocation7 [shape = 'u8[32768]{0}', space=vmem, size = 0x8000, scoped, tag = 'input window, operand 3, single buffered']
    #allocation8 [shape = 'u8[8192]{0}', space=vmem, size = 0x2000, scoped, tag = 'output window, operand 0, single buffered']
    %10 = vsyncpa [#allocation3], 0
    %11 = vsyncpa [#allocation6], 0
    %12 = vsyncpa [#allocation4], 0
    // Predicated region
    $region2: #{tpu_custom_call.1} parent=1 // pred_check
      _
    $region3: #{tpu_custom_call.1} parent=1 // pred_check_branch
      %14 = sbr.rel (0) target = $region5
    $region4: #{tpu_custom_call.1} parent=1 // pred_region
      %s16 = ssub.s32 256, 256
      %17 = vsyncadd [#allocation3], %s16
      %s18 = sshll.u32 [#allocation2], 4
      %s19 = int_to_ptr.vmem [resolvable:$true] %s18
      %24 = dma.hbm_to_vmem [thread:$0]  %s0, 256, %s19, [#allocation3], 128, 128, 8
    $region5: #{tpu_custom_call.1} parent=1 // pred_fallthru
      _
    // Predicated region
    $region6: #{tpu_custom_call.1} parent=1 // pred_check
      _
    $region7: #{tpu_custom_call.1} parent=1 // pred_check_branch
      %26 = sbr.rel (0) target = $region9
    $region8: #{tpu_custom_call.1} parent=1 // pred_region
      %s28 = ssub.s32 2048, 2048
      %29 = vsyncadd [#allocation6], %s28
      %s30 = sshll.u32 [#allocation5], 4
      %s31 = int_to_ptr.vmem [resolvable:$true] %s30
      %36 = dma.hbm_to_vmem [thread:$0]  %s1, 2048, %s31, [#allocation6], 128, 128, 8
    $region9: #{tpu_custom_call.1} parent=1 // pred_fallthru
      _
    // Predicated region
    $region10: #{tpu_custom_call.1} parent=1 // pred_check
      _
    $region11: #{tpu_custom_call.1} parent=1 // pred_check_branch
      %38 = sbr.rel (0) target = $region13
    $region12: #{tpu_custom_call.1} parent=1 // pred_region
      _
    $region13: #{tpu_custom_call.1} parent=1 // pred_fallthru
      _
    // Predicated region
    $region14: #{tpu_custom_call.1} parent=1 // pred_check
      _
    $region15: #{tpu_custom_call.1} parent=1 // pred_check_branch
      %40 = sbr.rel (0) target = $region17
    $region16: #{tpu_custom_call.1} parent=1 // pred_region
      %s42 = ssub.s32 1024, 1024
      %43 = vsyncadd [#allocation6], %s42
      %s44 = sshll.u32 [#allocation7], 4
      %s45 = int_to_ptr.vmem [resolvable:$true] %s44
      %50 = dma.hbm_to_vmem [thread:$0]  %s3, 1024, %s45, [#allocation6], 64, 64, 4
    $region17: #{tpu_custom_call.1} parent=1 // pred_fallthru
      _
    // Predicated region
    $region18: #{tpu_custom_call.1} parent=1 // pred_check
      _
    $region19: #{tpu_custom_call.1} parent=1 // pred_check_branch
      %52 = sbr.rel (0) target = $region21
    $region20: #{tpu_custom_call.1} parent=1 // pred_region
      _
    $region21: #{tpu_custom_call.1} parent=1 // pred_fallthru
      _
    // Predicated region
    $region22: #{tpu_custom_call.1} parent=1 // pred_check
      _
    $region23: #{tpu_custom_call.1} parent=1 // pred_check_branch
      %54 = sbr.rel (0) target = $region25
    $region24: #{tpu_custom_call.1} parent=1 // pred_region
      %55 = dma.done [#allocation3], 256
    $region25: #{tpu_custom_call.1} parent=1 // pred_fallthru
      _
    // Predicated region
    $region26: #{tpu_custom_call.1} parent=1 // pred_check
      _
    $region27: #{tpu_custom_call.1} parent=1 // pred_check_branch
      %57 = sbr.rel (0) target = $region29
    $region28: #{tpu_custom_call.1} parent=1 // pred_region
      %58 = dma.done [#allocation6], 2048
    $region29: #{tpu_custom_call.1} parent=1 // pred_fallthru
      _
    // Predicated region
    $region30: #{tpu_custom_call.1} parent=1 // pred_check
      _
    $region31: #{tpu_custom_call.1} parent=1 // pred_check_branch
      %60 = sbr.rel (0) target = $region33
    $region32: #{tpu_custom_call.1} parent=1 // pred_region
      %61 = dma.done [#allocation6], 1024
    $region33: #{tpu_custom_call.1} parent=1 // pred_fallthru
      _
    %v63 = vld [vmem:[#allocation2] sm:$0xff]
    %v64 = vld [vmem:[#allocation2 + $0x8] sm:$0xff]
    %v65 = vpack.c.bf16 %v64, %v63
    %v66 = vld [vmem:[#allocation5] sm:$0xff]
    %v67 = vld [vmem:[#allocation5 + $0x8] sm:$0xff]
    %v68 = vld [vmem:[#allocation5 + $0x10] sm:$0xff]
    %v69 = vld [vmem:[#allocation5 + $0x18] sm:$0xff]
    %v70 = vld [vmem:[#allocation5 + $0x20] sm:$0xff]
    %v71 = vld [vmem:[#allocation5 + $0x28] sm:$0xff]
    %v72 = vld [vmem:[#allocation5 + $0x30] sm:$0xff]
    %v73 = vld [vmem:[#allocation5 + $0x38] sm:$0xff]
    %v74 = vld [vmem:[#allocation5 + $0x40] sm:$0xff]
    %v75 = vld [vmem:[#allocation5 + $0x48] sm:$0xff]
    %v76 = vld [vmem:[#allocation5 + $0x50] sm:$0xff]
    %v77 = vld [vmem:[#allocation5 + $0x58] sm:$0xff]
    %v78 = vld [vmem:[#allocation5 + $0x60] sm:$0xff]
    %v79 = vld [vmem:[#allocation5 + $0x68] sm:$0xff]
    %v80 = vld [vmem:[#allocation5 + $0x70] sm:$0xff]
    %v81 = vld [vmem:[#allocation5 + $0x78] sm:$0xff]
    %v82 = vld [vmem:[%s2] sm:$0x3]
    %v84 = vlaneseq
    %v85 = vshrl.u32 %v84, 7
    %v86 = vsub.s32 0, %v85
    %v87 = vrot.slane %v82, %v86
    %v88 = vlaneseq
    %v89 = vshrl.u32 %v88, 7
    %v90 = vsub.s32 1, %v89
    %v91 = vrot.slane %v82, %v90
    %v110 = vunpack.c.l.b16 %v66
    %v111 = vunpack.c.h.b16 %v66
    %v112 = vunpack.c.l.b16 %v67
    %v113 = vunpack.c.h.b16 %v67
    %v114 = vunpack.c.l.b16 %v68
    %v115 = vunpack.c.h.b16 %v68
    %v116 = vunpack.c.l.b16 %v69
    %v117 = vunpack.c.h.b16 %v69
    %v118 = vunpack.c.l.b16 %v70
    %v119 = vunpack.c.h.b16 %v70
    %v120 = vunpack.c.l.b16 %v71
    %v121 = vunpack.c.h.b16 %v71
    %v122 = vunpack.c.l.b16 %v72
    %v123 = vunpack.c.h.b16 %v72
    %v124 = vunpack.c.l.b16 %v73
    %v125 = vunpack.c.h.b16 %v73
    %v126 = vunpack.c.l.b16 %v74
    %v127 = vunpack.c.h.b16 %v74
    %v128 = vunpack.c.l.b16 %v75
    %v129 = vunpack.c.h.b16 %v75
    %v130 = vunpack.c.l.b16 %v76
    %v131 = vunpack.c.h.b16 %v76
    %v132 = vunpack.c.l.b16 %v77
    %v133 = vunpack.c.h.b16 %v77
    %v134 = vunpack.c.l.b16 %v78
    %v135 = vunpack.c.h.b16 %v78
    %v136 = vunpack.c.l.b16 %v79
    %v137 = vunpack.c.h.b16 %v79
    %v138 = vunpack.c.l.b16 %v80
    %v139 = vunpack.c.h.b16 %v80
    %v140 = vunpack.c.l.b16 %v81
    %v141 = vunpack.c.h.b16 %v81
    %v142 = vpack.c.b16 %v112, %v110
    %v143 = vpack.c.b16 %v113, %v111
    %v144 = vpack.c.b16 %v116, %v114
    %v145 = vpack.c.b16 %v117, %v115
    %v146 = vpack.c.b16 %v120, %v118
    %v147 = vpack.c.b16 %v121, %v119
    %v148 = vpack.c.b16 %v124, %v122
    %v149 = vpack.c.b16 %v125, %v123
    %v150 = vpack.c.b16 %v128, %v126
    %v151 = vpack.c.b16 %v129, %v127
    %v152 = vpack.c.b16 %v132, %v130
    %v153 = vpack.c.b16 %v133, %v131
    %v154 = vpack.c.b16 %v136, %v134
    %v155 = vpack.c.b16 %v137, %v135
    %v156 = vpack.c.b16 %v140, %v138
    %v157 = vpack.c.b16 %v141, %v139
    %174 = vmatprep.subr.bf16.mxu0 %v143
    %175 = vmatpush1.bf16.msra.mxu0 %v142
    %176 = vmatprep.subr.bf16.mxu0 %v145
    %177 = vmatpush1.bf16.msra.mxu0 %v144
    %178 = vmatprep.subr.bf16.mxu0 %v147
    %179 = vmatpush1.bf16.msra.mxu0 %v146
    %180 = vmatprep.subr.bf16.mxu0 %v149
    %181 = vmatpush1.bf16.msra.mxu0 %v148
    %182 = vmatprep.subr.bf16.mxu0 %v151
    %183 = vmatpush1.bf16.msra.mxu0 %v150
    %184 = vmatprep.subr.bf16.mxu0 %v153
    %185 = vmatpush1.bf16.msra.mxu0 %v152
    %186 = vmatprep.subr.bf16.mxu0 %v155
    %187 = vmatpush1.bf16.msra.mxu0 %v154
    %188 = vmatprep.subr.bf16.mxu0 %v157
    %189 = vmatpush1.bf16.msra.mxu0 %v156
    %190 = vmatprep.subr.bf16.mxu0 0
    %191 = vmatpush1.bf16.msra.mxu0 0
    %192 = vmatprep.subr.bf16.mxu0 0
    %193 = vmatpush1.bf16.msra.mxu0 0
    %194 = vmatprep.subr.bf16.mxu0 0
    %195 = vmatpush1.bf16.msra.mxu0 0
    %196 = vmatprep.subr.bf16.mxu0 0
    %197 = vmatpush1.bf16.msra.mxu0 0
    %198 = vmatprep.subr.bf16.mxu0 0
    %199 = vmatpush1.bf16.msra.mxu0 0
    %200 = vmatprep.subr.bf16.mxu0 0
    %201 = vmatpush1.bf16.msra.mxu0 0
    %202 = vmatprep.subr.bf16.mxu0 0
    %203 = vmatpush1.bf16.msra.mxu0 0
    %204 = vmatprep.subr.bf16.mxu0 0
    %205 = vmatpush1.bf16.msra.mxu0 0
    %206 = vmatprep.mubr.bf16.mxu0 0
    %207 = vmatmul.mubr.bf16.gmra.mrb[0].mxu0 %v65
    %v208 = vpop.f32.mrb[0].mxu0
    %v209 = vadd.f32 %v87, %v208
    %v210 = vpop.f32.mrb[0].mxu0
    %v211 = vadd.f32 %v91, %v210
    %v212 = vpop.f32.mrb[0].mxu0
    %v213 = vadd.f32 %v87, %v212
    %v214 = vpop.f32.mrb[0].mxu0
    %v215 = vadd.f32 %v91, %v214
    %216 = vdwg.mxu0
    %v217 = vxor.u32 %v211, 2147483648
    %v218 = vxor.u32 %v215, 2147483648
    %v219 = vmul.f32 %v217, 1.442695
    %v220 = vpow.pop %v219
    %v221 = vmul.f32 %v218, 1.442695
    %v222 = vpow.pop %v221
    %v223 = vadd.f32 %v220, 1.0
    %v224 = vadd.f32 %v222, 1.0
    %v225 = vrcp.pop %v223
    %v226 = vmul.f32 1.0, %v225
    %v227 = vrcp.pop %v224
    %v228 = vmul.f32 1.0, %v227
    %v229 = vmul.f32 %v211, %v226
    %v230 = vmul.f32 %v215, %v228
    %v231 = vmul.f32 %v209, %v229
    %v232 = vmul.f32 %v213, %v230
    %v233 = vpack.c.bf16 %v232, %v231
    %v234 = vld [vmem:[#allocation7] sm:$0xf]
    %v235 = vld [vmem:[#allocation7 + $0x4] sm:$0xf]
    %v236 = vld [vmem:[#allocation7 + $0x8] sm:$0xf]
    %v237 = vld [vmem:[#allocation7 + $0xc] sm:$0xf]
    %v238 = vld [vmem:[#allocation7 + $0x10] sm:$0xf]
    %v239 = vld [vmem:[#allocation7 + $0x14] sm:$0xf]
    %v240 = vld [vmem:[#allocation7 + $0x18] sm:$0xf]
    %v241 = vld [vmem:[#allocation7 + $0x1c] sm:$0xf]
    %v242 = vld [vmem:[#allocation7 + $0x20] sm:$0xf]
    %v243 = vld [vmem:[#allocation7 + $0x24] sm:$0xf]
    %v244 = vld [vmem:[#allocation7 + $0x28] sm:$0xf]
    %v245 = vld [vmem:[#allocation7 + $0x2c] sm:$0xf]
    %v246 = vld [vmem:[#allocation7 + $0x30] sm:$0xf]
    %v247 = vld [vmem:[#allocation7 + $0x34] sm:$0xf]
    %v248 = vld [vmem:[#allocation7 + $0x38] sm:$0xf]
    %v249 = vld [vmem:[#allocation7 + $0x3c] sm:$0xf]
    %v250 = vld [vmem:[%s4] sm:$0x1]
    %v252 = vlaneseq
    %v253 = vshrl.u32 %v252, 7
    %v254 = vsub.s32 0, %v253
    %v255 = vrot.slane %v250, %v254
    %v273 = vunpack.c.l.b16 %v234
    %v274 = vunpack.c.l.b16 %v235
    %v275 = vunpack.c.l.b16 %v236
    %v276 = vunpack.c.l.b16 %v237
    %v277 = vunpack.c.l.b16 %v238
    %v278 = vunpack.c.l.b16 %v239
    %v279 = vunpack.c.l.b16 %v240
    %v280 = vunpack.c.l.b16 %v241
    %v281 = vunpack.c.l.b16 %v242
    %v282 = vunpack.c.l.b16 %v243
    %v283 = vunpack.c.l.b16 %v244
    %v284 = vunpack.c.l.b16 %v245
    %v285 = vunpack.c.l.b16 %v246
    %v286 = vunpack.c.l.b16 %v247
    %v287 = vunpack.c.l.b16 %v248
    %v288 = vunpack.c.l.b16 %v249
    %v289 = vpack.c.b16 %v274, %v273
    %v290 = vpack.c.b16 %v276, %v275
    %v291 = vpack.c.b16 %v278, %v277
    %v292 = vpack.c.b16 %v280, %v279
    %v293 = vpack.c.b16 %v282, %v281
    %v294 = vpack.c.b16 %v284, %v283
    %v295 = vpack.c.b16 %v286, %v285
    %v296 = vpack.c.b16 %v288, %v287
    %305 = vmatprep.subr.bf16.mxu0 0
    %306 = vmatpush1.bf16.msra.mxu0 %v289
    %307 = vmatprep.subr.bf16.mxu0 0
    %308 = vmatpush1.bf16.msra.mxu0 %v290
    %309 = vmatprep.subr.bf16.mxu0 0
    %310 = vmatpush1.bf16.msra.mxu0 %v291
    %311 = vmatprep.subr.bf16.mxu0 0
    %312 = vmatpush1.bf16.msra.mxu0 %v292
    %313 = vmatprep.subr.bf16.mxu0 0
    %314 = vmatpush1.bf16.msra.mxu0 %v293
    %315 = vmatprep.subr.bf16.mxu0 0
    %316 = vmatpush1.bf16.msra.mxu0 %v294
    %317 = vmatprep.subr.bf16.mxu0 0
    %318 = vmatpush1.bf16.msra.mxu0 %v295
    %319 = vmatprep.subr.bf16.mxu0 0
    %320 = vmatpush1.bf16.msra.mxu0 %v296
    %321 = vmatprep.subr.bf16.mxu0 0
    %322 = vmatpush1.bf16.msra.mxu0 0
    %323 = vmatprep.subr.bf16.mxu0 0
    %324 = vmatpush1.bf16.msra.mxu0 0
    %325 = vmatprep.subr.bf16.mxu0 0
    %326 = vmatpush1.bf16.msra.mxu0 0
    %327 = vmatprep.subr.bf16.mxu0 0
    %328 = vmatpush1.bf16.msra.mxu0 0
    %329 = vmatprep.subr.bf16.mxu0 0
    %330 = vmatpush1.bf16.msra.mxu0 0
    %331 = vmatprep.subr.bf16.mxu0 0
    %332 = vmatpush1.bf16.msra.mxu0 0
    %333 = vmatprep.subr.bf16.mxu0 0
    %334 = vmatpush1.bf16.msra.mxu0 0
    %335 = vmatprep.subr.bf16.mxu0 0
    %336 = vmatpush1.bf16.msra.mxu0 0
    %337 = vmatprep.mubr.bf16.mxu0 0
    %338 = vmatmul.mubr.bf16.gmra.mrb[0].mxu0 %v233
    %v339 = vpop.f32.mrb[0].mxu0
    %v340 = vadd.f32 %v255, %v339
    %v341 = vpop.f32.mrb[0].mxu0
    %v342 = vpop.f32.mrb[0].mxu0
    %v343 = vadd.f32 %v255, %v342
    %v344 = vpop.f32.mrb[0].mxu0
    %345 = vdwg.mxu0
    %346 = vst [vmem:[#allocation8] sm:$0xff] %v340
    %347 = vst [vmem:[#allocation8 + $0x8] sm:$0xff] %v343
    // Predicated region
    $region34: #{tpu_custom_call.1} parent=1 // pred_check
      _
    $region35: #{tpu_custom_call.1} parent=1 // pred_check_branch
      %349 = sbr.rel (0) target = $region37
    $region36: #{tpu_custom_call.1} parent=1 // pred_region
      %s351 = ssub.s32 256, 256
      %352 = vsyncadd [#allocation4], %s351
      %s353 = sshll.u32 [#allocation8], 4
      %s354 = int_to_ptr.vmem [resolvable:$true] %s353
      %359 = dma.vmem_to_hbm [thread:$0]  %s354, 256, %s5, [#allocation4], 128, 128, 8
    $region37: #{tpu_custom_call.1} parent=1 // pred_fallthru
      _
    // Predicated region
    $region38: #{tpu_custom_call.1} parent=1 // pred_check
      _
    $region39: #{tpu_custom_call.1} parent=1 // pred_check_branch
      %361 = sbr.rel (0) target = $region41
    $region40: #{tpu_custom_call.1} parent=1 // pred_region
      %362 = dma.done [#allocation4], 256
    $region41: #{tpu_custom_call.1} parent=1 // pred_fallthru
      _
    %363 = vsyncpa [#allocation3], 1
    %364 = vsyncpa [#allocation6], 1
    %365 = vsyncpa [#allocation4], 1

</llo_original>
